<compile_context>
chip_gen: v6e
topology: v6e:2x2x1
jax: 0.10.0
libtpu: 0.0.40
codegen_flags: <defaults>
</compile_context>

<pallas_src>
import functools

import jax
import jax.numpy as jnp
from jax.experimental import pallas as pl
from jax.experimental.pallas import tpu as pltpu


def _round_up(x, m):
    return ((x + m - 1) // m) * m


# ---------------------------------------------------------------------------
# Feature detection: single-buffered (pipeline_mode=pl.Buffered(1)) operands.
# ---------------------------------------------------------------------------
def _copy_probe_kernel(x_ref, o_ref):
    o_ref[...] = x_ref[...]


_SINGLE_BUFFER_OK = None


def _single_buffer_supported():
    """Probe pl.Buffered(1) with a tiny kernel so real errors on the main
    kernel are never masked by a broad fallback."""
    global _SINGLE_BUFFER_OK
    if _SINGLE_BUFFER_OK is not None:
        return _SINGLE_BUFFER_OK
    try:
        spec = pl.BlockSpec((8, 128), lambda i: (0, 0),
                            pipeline_mode=pl.Buffered(1))
        out = pl.pallas_call(
            _copy_probe_kernel,
            out_shape=jax.ShapeDtypeStruct((16, 128), jnp.float32),
            grid=(2,),
            in_specs=[spec],
            out_specs=pl.BlockSpec((8, 128), lambda i: (i, 0)),
        )(jnp.zeros((8, 128), jnp.float32))
        jax.block_until_ready(out)
        _SINGLE_BUFFER_OK = True
    except Exception:
        _SINGLE_BUFFER_OK = False
    return _SINGLE_BUFFER_OK


# ---------------------------------------------------------------------------
# Kernel body.
# ---------------------------------------------------------------------------
def _deberta_output_kernel(x_ref, w_ref, params_ref, res_ref, o_ref, *,
                           eps, inv_h, compute_dtype):
    # Cast the activation tile in VMEM (cheaper than an extra HBM pass in the
    # wrapper); weight arrives already in compute_dtype and (I, H) layout.
    x = x_ref[...].astype(compute_dtype)
    # MXU matmul: (tm, I) @ (I, H) -> (tm, H), fp32 accumulation.
    h = jnp.dot(x, w_ref[...], preferred_element_type=jnp.float32)

    params = params_ref[...].astype(jnp.float32)       # (3, H): bias/gamma/beta
    h = h + params[0:1, :] + res_ref[...].astype(jnp.float32)
    # TODO(synk): dropout omitted (inference / eval mode -> identity).

    # DebertaLayerNorm in fp32: two-pass variance (numerically stable),
    # sums * precomputed 1/H, rsqrt on the EUP.
    mean = jnp.sum(h, axis=-1, keepdims=True) * inv_h
    centered = h - mean
    var = jnp.sum(centered * centered, axis=-1, keepdims=True) * inv_h
    norm = centered * jax.lax.rsqrt(var + eps)
    o_ref[...] = (params[1:2, :] * norm + params[2:3, :]).astype(o_ref.dtype)


def _const_spec(shape, single_buffer):
    index_map = lambda i: (0,) * len(shape)
    if single_buffer:
        # Grid-invariant operand: one resident VMEM copy instead of two.
        return pl.BlockSpec(shape, index_map, pipeline_mode=pl.Buffered(1))
    return pl.BlockSpec(shape, index_map)


# ---------------------------------------------------------------------------
# Tile / VMEM selection (generation-aware).
# ---------------------------------------------------------------------------
def _vmem_capacity_bytes():
    try:
        return int(pltpu.get_tpu_info().vmem_capacity_bytes)
    except Exception:
        return 64 * 1024 * 1024        # conservative (v7x per-TC)


def _default_tm(compute_dtype):
    tm = 256
    try:
        kind = jax.devices()[0].device_kind.lower()
    except Exception:
        kind = ""
    # v6e: 128 MiB VMEM and a bandwidth-bound steady state -> bigger row tiles
    # amortize the ~0.35us/step overhead. v5e is compute-bound here (keep 256);
    # v7x only has 64 MiB (keep 256).
    if "v6" in kind and jnp.dtype(compute_dtype) == jnp.dtype(jnp.bfloat16):
        tm = 512
    return tm


def _pick_tile_and_vmem(M, I, H, *, x_itemsize, w_itemsize, res_itemsize,
                        out_itemsize, tm_req, single_buffer):
    phys = _vmem_capacity_bytes()
    ceiling = (phys * 3) // 4

    tm = max(8, min(_round_up(int(tm_req), 8), _round_up(M, 8)))
    # Megacore (v7x has 2 TCs): make sure the "parallel" row axis has >= 2
    # grid steps so both cores get work for small batch*seq.
    if M > 8 and pl.cdiv(M, tm) < 2:
        tm = max(8, _round_up(pl.cdiv(M, 2), 8))

    w_bufs = 1 if single_buffer else 2

    def need(t):
        return (w_bufs * I * H * w_itemsize        # weight
                + 2 * t * I * x_itemsize           # x tiles (double-buffered)
                + 2 * t * H * res_itemsize         # residual tiles
                + 2 * t * H * out_itemsize         # output tiles
                + 2 * 3 * H * 4)                   # bias/gamma/beta

    # Shrink the row tile if the working set would not fit comfortably.
    while need(tm) > ceiling and tm > 8:
        tm = max(8, _round_up(tm // 2, 8))

    vmem_limit = min(max(need(tm) + (16 << 20), 32 << 20), ceiling)
    return tm, int(vmem_limit)


# ---------------------------------------------------------------------------
# Public wrapper.
# ---------------------------------------------------------------------------
def deberta_output(hidden_states, input_tensor, w, b, gamma, beta, *,
                   eps=1e-7, tm=None, compute_dtype=jnp.bfloat16):
    """Fused dense + residual-add + DebertaLayerNorm (inference).

    hidden_states: (..., I)    input_tensor: (..., H)
    w: PyTorch nn.Linear weight of shape (H, I);  b, gamma, beta: (H,)
    compute_dtype: MXU input dtype (default bf16; accumulation & LN are fp32).
    """
    lead = hidden_states.shape[:-1]
    I = hidden_states.shape[-1]
    H = w.shape[0]
    out_dtype = hidden_states.dtype

    x = hidden_states.reshape(-1, I)        # stays in its HBM dtype; cast in-kernel
    res = input_tensor.reshape(-1, H)
    M = x.shape[0]

    cdt = jnp.dtype(compute_dtype) if compute_dtype is not None else x.dtype
    # Weight: cast + transpose ONCE to (I, H) -> standard NN contraction in the
    # kernel, no per-grid-step transpose (constant-foldable for frozen weights).
    w_t = jnp.asarray(w, cdt).T
    # Stack the three tiny per-channel vectors into one grid-invariant operand.
    params = jnp.stack([b, gamma, beta]).astype(jnp.float32)     # (3, H)

    single_buffer = _single_buffer_supported()
    if tm is None:
        tm = _default_tm(cdt)
    tm, vmem_limit = _pick_tile_and_vmem(
        M, I, H,
        x_itemsize=x.dtype.itemsize, w_itemsize=w_t.dtype.itemsize,
        res_itemsize=res.dtype.itemsize,
        out_itemsize=jnp.dtype(out_dtype).itemsize,
        tm_req=tm, single_buffer=single_buffer)

    grid = (pl.cdiv(M, tm),)     # ragged tail handled by Pallas block masking

    kernel = functools.partial(_deberta_output_kernel, eps=float(eps),
                               inv_h=1.0 / float(H), compute_dtype=cdt)

    cost = pl.CostEstimate(
        flops=2 * M * I * H,
        transcendentals=M,        # one rsqrt per row
        bytes_accessed=(M * I * x.dtype.itemsize
                        + I * H * w_t.dtype.itemsize
                        + M * H * res.dtype.itemsize
                        + M * H * jnp.dtype(out_dtype).itemsize
                        + 3 * H * 4),
    )

    out = pl.pallas_call(
        kernel,
        out_shape=jax.ShapeDtypeStruct((M, H), out_dtype),
        grid_spec=pltpu.PrefetchScalarGridSpec(
            num_scalar_prefetch=0,
            grid=grid,
            in_specs=[
                pl.BlockSpec((tm, I), lambda i: (i, 0)),   # x row tile
                _const_spec((I, H), single_buffer),        # weight (I, H)
                _const_spec((3, H), single_buffer),        # bias/gamma/beta
                pl.BlockSpec((tm, H), lambda i: (i, 0)),   # residual row tile
            ],
            out_specs=pl.BlockSpec((tm, H), lambda i: (i, 0)),
        ),
        compiler_params=pltpu.CompilerParams(
            dimension_semantics=("parallel",),
            vmem_limit_bytes=vmem_limit,
        ),
        cost_estimate=cost,
    )(x, w_t, params, res)

    return out.reshape(*lead, H)


# ---------------------------------------------------------------------------
# Pure-JAX reference (mirrors DebertaOutput forward in eval mode).
# ---------------------------------------------------------------------------
def _reference(hidden_states, input_tensor, w, b, gamma, beta, *,
               eps=1e-7, compute_dtype=None):
    cdt = hidden_states.dtype if compute_dtype is None else compute_dtype
    h = jnp.einsum("...i,hi->...h", hidden_states.astype(cdt), w.astype(cdt),
                   preferred_element_type=jnp.float32)
    h = h + b.astype(jnp.float32) + input_tensor.astype(jnp.float32)
    mean = jnp.mean(h, axis=-1, keepdims=True)
    var = jnp.mean((h - mean) ** 2, axis=-1, keepdims=True)
    norm = (h - mean) / jnp.sqrt(var + eps)
    y = gamma.astype(jnp.float32) * norm + beta.astype(jnp.float32)
    return y.astype(hidden_states.dtype)


if __name__ == "__main__":
    eps = 1e-7
    key = jax.random.PRNGKey(0)

    def run_case(batch, seq, hidden, intermediate, *, tm=None,
                 compute_dtype=jnp.bfloat16, atol=2e-3):
        k1, k2, k3, k4, k5 = jax.random.split(
            jax.random.fold_in(key, batch * 1000 + seq), 5)
        hidden_states = jax.random.normal(
            k1, (batch, seq, intermediate), jnp.float32)
        input_tensor = jax.random.normal(k2, (batch, seq, hidden), jnp.float32)
        # Parameters per nn.Linear / DebertaLayerNorm in __init__.
        w = jax.random.normal(k3, (hidden, intermediate), jnp.float32) * 0.02
        b = jax.random.normal(k4, (hidden,), jnp.float32) * 0.02
        gamma = 1.0 + 0.1 * jax.random.normal(k5, (hidden,), jnp.float32)
        beta = 0.05 * jax.random.normal(
            jax.random.fold_in(k5, 1), (hidden,), jnp.float32)

        out = deberta_output(hidden_states, input_tensor, w, b, gamma, beta,
                             eps=eps, tm=tm, compute_dtype=compute_dtype)
        out = jax.block_until_ready(out)
        ref = _reference(hidden_states, input_tensor, w, b, gamma, beta,
                         eps=eps, compute_dtype=compute_dtype)
        assert out.shape == (batch, seq, hidden)
        err = float(jnp.max(jnp.abs(out - ref)))
        assert jnp.allclose(out, ref, atol=atol, rtol=atol), (
            f"mismatch vs reference, max abs err {err:.3e}")

    # bf16 MXU path; seq=9 -> M=18 exercises the ragged (masked) tail block
    # and the >=2-step grid clamp (v7x megacore sharding).
    run_case(batch=2, seq=9, hidden=128, intermediate=256)
    # fp32 path, multi-step grid, explicit tile override.
    run_case(batch=4, seq=96, hidden=128, intermediate=256, tm=64,
             compute_dtype=jnp.float32, atol=1e-4)

    print("KERNEL_OK")
</pallas_src>

<mosaic_0001>
module attributes {stable_mosaic.version = 11 : i64} {
  func.func @_copy_probe_kernel(%arg0: i32, %arg1: memref<8x128xf32, #tpu.memory_space<vmem>>, %arg2: memref<8x128xf32, #tpu.memory_space<vmem>>) attributes {dimension_semantics = [#tpu.dimension_semantics<arbitrary>], iteration_bounds = array<i64: 2>, scalar_prefetch = 0 : i64, scratch_operands = 0 : i64, tpu.core_type = #tpu.core_type<tc>, window_params = [{pipeline_mode = #tpu.pipeline_mode<synchronous>, transform_indices = @transform_0, window_bounds = array<i64: 8, 128>}, {transform_indices = @transform_1, window_bounds = array<i64: 8, 128>}]} {
    %c0 = arith.constant 0 : index
    %c0_0 = arith.constant 0 : index
    %0 = vector.load %arg1[%c0, %c0_0] : memref<8x128xf32, #tpu.memory_space<vmem>>, vector<8x128xf32>
    %c0_1 = arith.constant 0 : index
    %c0_2 = arith.constant 0 : index
    %1 = vector.load %arg2[%c0_1, %c0_2] : memref<8x128xf32, #tpu.memory_space<vmem>>, vector<8x128xf32>
    tpu.vector_store %arg2[%c0_1, %c0_2], %0 {strides = array<i32>} : memref<8x128xf32, #tpu.memory_space<vmem>>, vector<8x128xf32>,
    return
  }
  func.func @transform_0(%arg0: i32) -> (i32, i32) {
    %c0_i32 = arith.constant 0 : i32
    %c0_i32_0 = arith.constant 0 : i32
    %c0_i32_1 = arith.constant 0 : i32
    return %c0_i32, %c0_i32_0 : i32, i32
  }
  func.func @transform_1(%arg0: i32) -> (i32, i32) {
    %c0_i32 = arith.constant 0 : i32
    %c0_i32_0 = arith.constant 0 : i32
    return %arg0, %c0_i32 : i32, i32
  }
}

module attributes {stable_mosaic.version = 11 : i64} {
  func.func @_deberta_output_kernel(%arg0: i32, %arg1: memref<16x256xf32, #tpu.memory_space<vmem>>, %arg2: memref<256x128xbf16, #tpu.memory_space<vmem>>, %arg3: memref<3x128xf32, #tpu.memory_space<vmem>>, %arg4: memref<16x128xf32, #tpu.memory_space<vmem>>, %arg5: memref<16x128xf32, #tpu.memory_space<vmem>>) attributes {dimension_semantics = [#tpu.dimension_semantics<parallel>], iteration_bounds = array<i64: 2>, scalar_prefetch = 0 : i64, scratch_operands = 0 : i64, tpu.core_type = #tpu.core_type<tc>, window_params = [{transform_indices = @transform_0, window_bounds = array<i64: 16, 256>}, {pipeline_mode = #tpu.pipeline_mode<synchronous>, transform_indices = @transform_1, window_bounds = array<i64: 256, 128>}, {pipeline_mode = #tpu.pipeline_mode<synchronous>, transform_indices = @transform_2, window_bounds = array<i64: 3, 128>}, {transform_indices = @transform_3, window_bounds = array<i64: 16, 128>}, {transform_indices = @transform_4, window_bounds = array<i64: 16, 128>}]} {
    %c0 = arith.constant 0 : index
    %c0_0 = arith.constant 0 : index
    %0 = vector.load %arg1[%c0, %c0_0] : memref<16x256xf32, #tpu.memory_space<vmem>>, vector<16x256xf32>
    %1 = arith.truncf %0 : vector<16x256xf32> to vector<16x256xbf16>
    %c0_1 = arith.constant 0 : index
    %c0_2 = arith.constant 0 : index
    %2 = vector.load %arg2[%c0_1, %c0_2] : memref<256x128xbf16, #tpu.memory_space<vmem>>, vector<256x128xbf16>
    %cst = arith.constant dense<0.000000e+00> : vector<16x128xf32>
    %3 = tpu.matmul %1, %2, %cst {dimension_numbers = #tpu.dot_dimension_numbers<[1], [0], [0], [1], [0, 0, 1, 1], [], []>} : vector<16x256xbf16>, vector<256x128xbf16>, vector<16x128xf32> -> vector<16x128xf32>
    %c0_3 = arith.constant 0 : index
    %c0_4 = arith.constant 0 : index
    %4 = vector.load %arg3[%c0_3, %c0_4] : memref<3x128xf32, #tpu.memory_space<vmem>>, vector<3x128xf32>
    %5 = vector.extract_strided_slice %4 {offsets = [0, 0], sizes = [1, 128], strides = [1, 1]} : vector<3x128xf32> to vector<1x128xf32>
    %6 = vector.broadcast %5 : vector<1x128xf32> to vector<16x128xf32>
    %7 = arith.addf %3, %6 : vector<16x128xf32>
    %c0_5 = arith.constant 0 : index
    %c0_6 = arith.constant 0 : index
    %8 = vector.load %arg4[%c0_5, %c0_6] : memref<16x128xf32, #tpu.memory_space<vmem>>, vector<16x128xf32>
    %9 = arith.addf %7, %8 : vector<16x128xf32>
    %cst_7 = arith.constant dense<0.000000e+00> : vector<16xf32>
    %10 = vector.multi_reduction <add>, %9, %cst_7 [1] : vector<16x128xf32> to vector<16xf32>
    %11 = vector.shape_cast %10 : vector<16xf32> to vector<16x1xf32>
    %cst_8 = arith.constant 7.812500e-03 : f32
    %12 = vector.broadcast %cst_8 : f32 to vector<16x1xf32>
    %13 = arith.mulf %11, %12 : vector<16x1xf32>
    %14 = vector.broadcast %13 : vector<16x1xf32> to vector<16x128xf32>
    %15 = arith.subf %9, %14 : vector<16x128xf32>
    %16 = arith.mulf %15, %15 : vector<16x128xf32>
    %cst_9 = arith.constant dense<0.000000e+00> : vector<16xf32>
    %17 = vector.multi_reduction <add>, %16, %cst_9 [1] : vector<16x128xf32> to vector<16xf32>
    %18 = vector.shape_cast %17 : vector<16xf32> to vector<16x1xf32>
    %cst_10 = arith.constant 7.812500e-03 : f32
    %19 = vector.broadcast %cst_10 : f32 to vector<16x1xf32>
    %20 = arith.mulf %18, %19 : vector<16x1xf32>
    %cst_11 = arith.constant 1.000000e-07 : f32
    %21 = vector.broadcast %cst_11 : f32 to vector<16x1xf32>
    %22 = arith.addf %20, %21 : vector<16x1xf32>
    %23 = math.rsqrt %22 : vector<16x1xf32>
    %24 = vector.broadcast %23 : vector<16x1xf32> to vector<16x128xf32>
    %25 = arith.mulf %15, %24 : vector<16x128xf32>
    %26 = vector.extract_strided_slice %4 {offsets = [1, 0], sizes = [1, 128], strides = [1, 1]} : vector<3x128xf32> to vector<1x128xf32>
    %27 = vector.broadcast %26 : vector<1x128xf32> to vector<16x128xf32>
    %28 = arith.mulf %27, %25 : vector<16x128xf32>
    %29 = vector.extract_strided_slice %4 {offsets = [2, 0], sizes = [1, 128], strides = [1, 1]} : vector<3x128xf32> to vector<1x128xf32>
    %30 = vector.broadcast %29 : vector<1x128xf32> to vector<16x128xf32>
    %31 = arith.addf %28, %30 : vector<16x128xf32>
    %c0_12 = arith.constant 0 : index
    %c0_13 = arith.constant 0 : index
    %32 = vector.load %arg5[%c0_12, %c0_13] : memref<16x128xf32, #tpu.memory_space<vmem>>, vector<16x128xf32>
    tpu.vector_store %arg5[%c0_12, %c0_13], %31 {strides = array<i32>} : memref<16x128xf32, #tpu.memory_space<vmem>>, vector<16x128xf32>,
    return
  }
  func.func @transform_0(%arg0: i32) -> (i32, i32) {
    %c0_i32 = arith.constant 0 : i32
    %c0_i32_0 = arith.constant 0 : i32
    return %arg0, %c0_i32 : i32, i32
  }
  func.func @transform_1(%arg0: i32) -> (i32, i32) {
    %c0_i32 = arith.constant 0 : i32
    %c0_i32_0 = arith.constant 0 : i32
    %c0_i32_1 = arith.constant 0 : i32
    return %c0_i32, %c0_i32_0 : i32, i32
  }
  func.func @transform_2(%arg0: i32) -> (i32, i32) {
    %c0_i32 = arith.constant 0 : i32
    %c0_i32_0 = arith.constant 0 : i32
    %c0_i32_1 = arith.constant 0 : i32
    return %c0_i32, %c0_i32_0 : i32, i32
  }
  func.func @transform_3(%arg0: i32) -> (i32, i32) {
    %c0_i32 = arith.constant 0 : i32
    %c0_i32_0 = arith.constant 0 : i32
    return %arg0, %c0_i32 : i32, i32
  }
  func.func @transform_4(%arg0: i32) -> (i32, i32) {
    %c0_i32 = arith.constant 0 : i32
    %c0_i32_0 = arith.constant 0 : i32
    return %arg0, %c0_i32 : i32, i32
  }
}

</mosaic_0001>

<llo_original>
// kernel: tpu_custom_call.1
$region0: #{tpu_custom_call.1}
  #allocation0 [shape = 'u32[]', space=smem, size = 0x4, offset = 0x4, fixed_abs, tag = 'smem constant byte address 0x4 - core index']
  #allocation1 [shape = 'u32[144,128]{1,0:T(1,128)}', space=vmem, size = 0x12000, scoped, tag = 'internal scratch']
  %s0 = inlined_call_operand.hbm [shape: f32[8,128], index: 0, kind: input, shape index: {}]
  %s1 = inlined_call_operand.hbm [shape: f32[16,128], index: 1, kind: output, shape index: {}]
  %s2 = sld [smem:[#allocation0]]
  $region41: #{tpu_custom_call.1} parent=0
    _
  %s4 = ssub.s32 1, %s2
  %s5 = scalar_select 0, %s4, %s2
  $region1: #{tpu_custom_call.1} parent=0
    #allocation2 [shape = 'u8[4096]{0}', space=vmem, size = 0x1000, scoped, tag = 'input window, operand 0, single buffered']
    #allocation3 [shape = 's32[2]{0}', space=sflag, size = 0x8, scoped, tag = 'scoped memory for tpu_custom_call.1']
    #allocation4 [shape = 's32[2]{0}', space=sflag, size = 0x8, scoped, tag = 'scoped memory for tpu_custom_call.1']
    #allocation5 [shape = 'u8[8192]{0}', space=vmem, size = 0x2000, scoped, tag = 'output window, operand 0']
    %6 = vsyncpa [#allocation3], 0
    %7 = vsyncpa [#allocation4], 0
    %s8 = scalar_lea.sflag [#allocation4], 1
    %9 = vsyncpa %s8, 0
    loop: start=0, step=1, limit=4
    $region2: #{tpu_custom_call.1} parent=1 // loop_pre_header
      _
    $region3: #{tpu_custom_call.1} parent=1 // loop_header
      %s11 = sphi 0, %s15
      %p12 = scmp.ge.s32.totalorder %s11, 4
      %s19 = sphi 0, %s19
      %s21 = sphi 0, %s19
      %s22 = sphi 0, %s21
      %s36 = sphi 0, %s22
      %s42 = sphi 0, %s44
      %s45 = sphi 0, %s42
      %s46 = sphi 0, %s45
      %s62 = sphi 0, %s46
    $region4: #{tpu_custom_call.1} parent=1 // loop_header_branch
      %14 = sbr.rel (%p12) target = $region8
    $region5: #{tpu_custom_call.1} parent=1 // loop_body
      %s16 = ssub.s32 %s11, 1
      %s17 = ssub.s32 %s11, 2
      %s18 = sadd.s32 %s11, 1
      %s20 = sadd.s32 %s19, 1
      %p23 = scmp.eq.s32.totalorder %s11, 1
      %p24 = scmp.ne.s32.totalorder %s19, %s21
      %p25 = scmp.eq.s32.totalorder %s11, 0
      %p26 = por %p24, %p25
      %p27 = scmp.ne.s32.totalorder %s19, %s21
      %p28 = scmp.eq.s32.totalorder %s16, 1
      %p29 = por %p27, %p28
      %p30 = scmp.ne.s32.totalorder %s21, %s22
      %p31 = scmp.eq.s32.totalorder %s16, 0
      %p32 = por %p30, %p31
      %p33 = scmp.ne.s32.totalorder %s21, %s22
      %p34 = scmp.eq.s32.totalorder %s17, 1
      %p35 = por %p33, %p34
      %p37 = scmp.ne.s32.totalorder %s22, %s36
      %p38 = scmp.eq.s32.totalorder %s17, 0
      %p39 = por %p37, %p38
      %s40 = ssub.s32 %s11, %s18
      %p41 = scmp.eq.s32.totalorder %s40, 0
      %s43 = sadd.s32 %s42, 1
      %s44 = scalar_select %p41, %s42, %s43
      %p47 = pneg %p41
      %p48 = scmp.eq.s32.totalorder %s11, 1
      %p49 = por %p47, %p48
      %p50 = scmp.ne.s32.totalorder %s42, %s45
      %p51 = scmp.eq.s32.totalorder %s11, 0
      %p52 = por %p50, %p51
      %p53 = scmp.ne.s32.totalorder %s42, %s45
      %p54 = scmp.eq.s32.totalorder %s16, 1
      %p55 = por %p53, %p54
      %p56 = scmp.ne.s32.totalorder %s45, %s46
      %p57 = scmp.eq.s32.totalorder %s16, 0
      %p58 = por %p56, %p57
      %p59 = scmp.ne.s32.totalorder %s45, %s46
      %p60 = scmp.eq.s32.totalorder %s17, 1
      %p61 = por %p59, %p60
      %p63 = scmp.ne.s32.totalorder %s46, %s62
      %p64 = scmp.eq.s32.totalorder %s17, 0
      %p65 = por %p63, %p64
      %p66 = scmp.le.s32.totalorder 1, %s11
      %p67 = scmp.lt.s32.totalorder %s11, 3
      %p68 = pnand %p66, %p67
      %p69 = pneg %p68
      // Predicated region
      $region9: #{tpu_custom_call.1} parent=5 // pred_check
        _
      $region10: #{tpu_custom_call.1} parent=5 // pred_check_branch
        %71 = sbr.rel (%p68) target = $region12
      $region11: #{tpu_custom_call.1} parent=5 // pred_region
        %s72 = ssub.s32 %s11, 1
        // Predicated region
        $region13: #{tpu_custom_call.1} parent=11 // pred_check
          %p73 = pneg %p32
        $region14: #{tpu_custom_call.1} parent=11 // pred_check_branch
          %75 = sbr.rel (%p73) target = $region16
        $region15: #{tpu_custom_call.1} parent=11 // pred_region
          %s77 = ssub.s32 128, 128
          %78 = vsyncadd [#allocation3], %s77
          %s80 = sshll.u32 [#allocation2], 4
          %s81 = int_to_ptr.vmem [resolvable:$true] %s80
          %83 = dma.hbm_to_vmem [thread:$0]  %s0, 128, %s81, [#allocation3]
        $region16: #{tpu_custom_call.1} parent=11 // pred_fallthru
          _
      $region12: #{tpu_custom_call.1} parent=5 // pred_fallthru
        _
      %p84 = scmp.lt.s32.totalorder %s11, 2
      // Predicated region
      $region17: #{tpu_custom_call.1} parent=5 // pred_check
        %p85 = pneg %p84
      $region18: #{tpu_custom_call.1} parent=5 // pred_check_branch
        %87 = sbr.rel (%p85) target = $region20
      $region19: #{tpu_custom_call.1} parent=5 // pred_region
        _
      $region20: #{tpu_custom_call.1} parent=5 // pred_fallthru
        _
      %p88 = scmp.le.s32.totalorder 1, %s11
      %p89 = scmp.lt.s32.totalorder %s11, 3
      %p90 = pnand %p88, %p89
      %p91 = pneg %p90
      // Predicated region
      $region21: #{tpu_custom_call.1} parent=5 // pred_check
        _
      $region22: #{tpu_custom_call.1} parent=5 // pred_check_branch
        %93 = sbr.rel (%p90) target = $region24
      $region23: #{tpu_custom_call.1} parent=5 // pred_region
        %s94 = ssub.s32 %s11, 1
        // Predicated region
        $region25: #{tpu_custom_call.1} parent=23 // pred_check
          %p95 = pneg %p32
        $region26: #{tpu_custom_call.1} parent=23 // pred_check_branch
          %97 = sbr.rel (%p95) target = $region28
        $region27: #{tpu_custom_call.1} parent=23 // pred_region
          %98 = dma.done [#allocation3], 128
        $region28: #{tpu_custom_call.1} parent=23 // pred_fallthru
          _
        %p99 = pneg %p32
        %p100 = pneg %p29
        %p101 = pneg %p58
        %p102 = pneg %p55
        %s103 = sand.u32 %s45, 1
        %s104 = scalar_lea.sflag [#allocation4], %s103
        %s105 = sand.u32 %s45, 1
        %s106 = smul.addr %s105, 8
        %s107 = scalar_lea.vmem [#allocation5], %s106
        %v108 = vld [vmem:[#allocation2] sm:$0xff]
        %109 = vst [vmem:[%s107] sm:$0xff] %v108
        %s110 = sand.u32 %s45, 1
        %s111 = scalar_lea.sflag [#allocation4], %s110
        %s112 = sand.u32 %s45, 1
        %s113 = smul.addr %s112, 8
        %s114 = scalar_lea.vmem [#allocation5], %s113
        // Predicated region
        $region29: #{tpu_custom_call.1} parent=23 // pred_check
          %p115 = pneg %p55
        $region30: #{tpu_custom_call.1} parent=23 // pred_check_branch
          %117 = sbr.rel (%p115) target = $region32
        $region31: #{tpu_custom_call.1} parent=23 // pred_region
          %s119 = ssub.s32 128, 128
          %120 = vsyncadd %s111, %s119
          %s121 = smul.addr %s16, 128
          %s122 = scalar_lea.hbm %s1, %s121
          %s124 = sshll.u32 %s114, 4
          %s125 = int_to_ptr.vmem [resolvable:$true] %s124
          %127 = dma.vmem_to_hbm [thread:$0]  %s125, 128, %s122, %s111
        $region32: #{tpu_custom_call.1} parent=23 // pred_fallthru
          _
      $region24: #{tpu_custom_call.1} parent=5 // pred_fallthru
        _
      %p128 = scmp.le.s32.totalorder 2, %s11
      // Predicated region
      $region33: #{tpu_custom_call.1} parent=5 // pred_check
        %p129 = pneg %p128
      $region34: #{tpu_custom_call.1} parent=5 // pred_check_branch
        %131 = sbr.rel (%p129) target = $region36
      $region35: #{tpu_custom_call.1} parent=5 // pred_region
        %s132 = ssub.s32 %s11, 2
        // Predicated region
        $region37: #{tpu_custom_call.1} parent=35 // pred_check
          %p133 = pneg %p61
        $region38: #{tpu_custom_call.1} parent=35 // pred_check_branch
          %135 = sbr.rel (%p133) target = $region40
        $region39: #{tpu_custom_call.1} parent=35 // pred_region
          %s136 = sand.u32 %s46, 1
          %s137 = scalar_lea.sflag [#allocation4], %s136
          %s138 = sand.u32 %s46, 1
          %s139 = smul.addr %s138, 8
          %s140 = scalar_lea.vmem [#allocation5], %s139
          %141 = dma.done %s137, 128
        $region40: #{tpu_custom_call.1} parent=35 // pred_fallthru
          _
      $region36: #{tpu_custom_call.1} parent=5 // pred_fallthru
        _
    $region6: #{tpu_custom_call.1} parent=1 // loop_footer
      %s15 = sadd.s32 1, %s11
    $region7: #{tpu_custom_call.1} parent=1 // loop_footer_branch
      %10 = sbr.rel target = $region3
    $region8: #{tpu_custom_call.1} parent=1 // loop_exit
      _
    %142 = vsyncpa [#allocation3], 1
    %s143 = scalar_lea.sflag [#allocation3], 1
    %144 = vsyncpa %s143, 1
    %145 = vsyncpa [#allocation4], 1
    %s146 = scalar_lea.sflag [#allocation4], 1
    %147 = vsyncpa %s146, 1

// kernel: tpu_custom_call.1
$region0: #{tpu_custom_call.1}
  #allocation0 [shape = 'u32[]', space=smem, size = 0x4, offset = 0x4, fixed_abs, tag = 'smem constant byte address 0x4 - core index']
  #allocation1 [shape = 'u32[144,128]{1,0:T(1,128)}', space=vmem, size = 0x12000, scoped, tag = 'internal scratch']
  %s0 = inlined_call_operand.hbm [shape: f32[18,256], index: 0, kind: input, shape index: {}]
  %s1 = inlined_call_operand.hbm [shape: bf16[256,128], index: 1, kind: input, shape index: {}]
  %s2 = inlined_call_operand.hbm [shape: f32[3,128], index: 2, kind: input, shape index: {}]
  %s3 = inlined_call_operand.hbm [shape: f32[18,128], index: 3, kind: input, shape index: {}]
  %s4 = inlined_call_operand.hbm [shape: f32[18,128], index: 4, kind: output, shape index: {}]
  %s5 = sld [smem:[#allocation0]]
  $region65: #{tpu_custom_call.1} parent=0
    _
  %s7 = ssub.s32 1, %s5
  %s8 = scalar_select 0, %s7, %s5
  $region1: #{tpu_custom_call.1} parent=0
    #allocation2 [shape = 'u8[32768]{0}', space=vmem, size = 0x8000, scoped, tag = 'input window, operand 0']
    #allocation3 [shape = 's32[2]{0}', space=sflag, size = 0x8, scoped, tag = 'scoped memory for tpu_custom_call.1']
    #allocation4 [shape = 's32[2]{0}', space=sflag, size = 0x8, scoped, tag = 'scoped memory for tpu_custom_call.1']
    #allocation5 [shape = 'u8[65536]{0}', space=vmem, size = 0x10000, scoped, tag = 'input window, operand 1, single buffered']
    #allocation6 [shape = 's32[1]{0}', space=sflag, size = 0x4, scoped, tag = 'scoped memory for tpu_custom_call.1']
    #allocation7 [shape = 'u8[2048]{0}', space=vmem, size = 0x800, scoped, tag = 'input window, operand 2, single buffered']
    #allocation8 [shape = 'u8[16384]{0}', space=vmem, size = 0x4000, scoped, tag = 'input window, operand 3']
    #allocation9 [shape = 's32[2]{0}', space=sflag, size = 0x8, scoped, tag = 'scoped memory for tpu_custom_call.1']
    #allocation10 [shape = 'u8[16384]{0}', space=vmem, size = 0x4000, scoped, tag = 'output window, operand 0']
    %9 = vsyncpa [#allocation3], 0
    %s10 = scalar_lea.sflag [#allocation3], 1
    %11 = vsyncpa %s10, 0
    %12 = vsyncpa [#allocation6], 0
    %13 = vsyncpa [#allocation9], 0
    %s14 = scalar_lea.sflag [#allocation9], 1
    %15 = vsyncpa %s14, 0
    %16 = vsyncpa [#allocation4], 0
    %s17 = scalar_lea.sflag [#allocation4], 1
    %18 = vsyncpa %s17, 0
    loop: start=0, step=1, limit=4
    $region2: #{tpu_custom_call.1} parent=1 // loop_pre_header
      _
    $region3: #{tpu_custom_call.1} parent=1 // loop_header
      %s20 = sphi 0, %s24
      %p21 = scmp.ge.s32.totalorder %s20, 4
      %s30 = sphi 0, %s32
      %s33 = sphi 0, %s30
      %s34 = sphi 0, %s33
      %s50 = sphi 0, %s34
      %s54 = sphi 0, %s54
      %s56 = sphi 0, %s54
      %s57 = sphi 0, %s56
      %s71 = sphi 0, %s57
      %s75 = sphi 0, %s75
      %s77 = sphi 0, %s75
      %s78 = sphi 0, %s77
      %s92 = sphi 0, %s78
      %s98 = sphi 0, %s100
      %s101 = sphi 0, %s98
      %s102 = sphi 0, %s101
      %s118 = sphi 0, %s102
      %s124 = sphi 0, %s126
      %s127 = sphi 0, %s124
      %s128 = sphi 0, %s127
      %s144 = sphi 0, %s128
    $region4: #{tpu_custom_call.1} parent=1 // loop_header_branch
      %23 = sbr.rel (%p21) target = $region8
    $region5: #{tpu_custom_call.1} parent=1 // loop_body
      %s25 = ssub.s32 %s20, 1
      %s26 = ssub.s32 %s20, 2
      %s27 = sadd.s32 %s20, 1
      %s28 = ssub.s32 %s20, %s27
      %p29 = scmp.eq.s32.totalorder %s28, 0
      %s31 = sadd.s32 %s30, 1
      %s32 = scalar_select %p29, %s30, %s31
      %p35 = pneg %p29
      %p36 = scmp.eq.s32.totalorder %s20, 1
      %p37 = por %p35, %p36
      %p38 = scmp.ne.s32.totalorder %s30, %s33
      %p39 = scmp.eq.s32.totalorder %s20, 0
      %p40 = por %p38, %p39
      %p41 = scmp.ne.s32.totalorder %s30, %s33
      %p42 = scmp.eq.s32.totalorder %s25, 1
      %p43 = por %p41, %p42
      %p44 = scmp.ne.s32.totalorder %s33, %s34
      %p45 = scmp.eq.s32.totalorder %s25, 0
      %p46 = por %p44, %p45
      %p47 = scmp.ne.s32.totalorder %s33, %s34
      %p48 = scmp.eq.s32.totalorder %s26, 1
      %p49 = por %p47, %p48
      %p51 = scmp.ne.s32.totalorder %s34, %s50
      %p52 = scmp.eq.s32.totalorder %s26, 0
      %p53 = por %p51, %p52
      %s55 = sadd.s32 %s54, 1
      %p58 = scmp.eq.s32.totalorder %s20, 1
      %p59 = scmp.ne.s32.totalorder %s54, %s56
      %p60 = scmp.eq.s32.totalorder %s20, 0
      %p61 = por %p59, %p60
      %p62 = scmp.ne.s32.totalorder %s54, %s56
      %p63 = scmp.eq.s32.totalorder %s25, 1
      %p64 = por %p62, %p63
      %p65 = scmp.ne.s32.totalorder %s56, %s57
      %p66 = scmp.eq.s32.totalorder %s25, 0
      %p67 = por %p65, %p66
      %p68 = scmp.ne.s32.totalorder %s56, %s57
      %p69 = scmp.eq.s32.totalorder %s26, 1
      %p70 = por %p68, %p69
      %p72 = scmp.ne.s32.totalorder %s57, %s71
      %p73 = scmp.eq.s32.totalorder %s26, 0
      %p74 = por %p72, %p73
      %s76 = sadd.s32 %s75, 1
      %p79 = scmp.eq.s32.totalorder %s20, 1
      %p80 = scmp.ne.s32.totalorder %s75, %s77
      %p81 = scmp.eq.s32.totalorder %s20, 0
      %p82 = por %p80, %p81
      %p83 = scmp.ne.s32.totalorder %s75, %s77
      %p84 = scmp.eq.s32.totalorder %s25, 1
      %p85 = por %p83, %p84
      %p86 = scmp.ne.s32.totalorder %s77, %s78
      %p87 = scmp.eq.s32.totalorder %s25, 0
      %p88 = por %p86, %p87
      %p89 = scmp.ne.s32.totalorder %s77, %s78
      %p90 = scmp.eq.s32.totalorder %s26, 1
      %p91 = por %p89, %p90
      %p93 = scmp.ne.s32.totalorder %s78, %s92
      %p94 = scmp.eq.s32.totalorder %s26, 0
      %p95 = por %p93, %p94
      %s96 = ssub.s32 %s20, %s27
      %p97 = scmp.eq.s32.totalorder %s96, 0
      %s99 = sadd.s32 %s98, 1
      %s100 = scalar_select %p97, %s98, %s99
      %p103 = pneg %p97
      %p104 = scmp.eq.s32.totalorder %s20, 1
      %p105 = por %p103, %p104
      %p106 = scmp.ne.s32.totalorder %s98, %s101
      %p107 = scmp.eq.s32.totalorder %s20, 0
      %p108 = por %p106, %p107
      %p109 = scmp.ne.s32.totalorder %s98, %s101
      %p110 = scmp.eq.s32.totalorder %s25, 1
      %p111 = por %p109, %p110
      %p112 = scmp.ne.s32.totalorder %s101, %s102
      %p113 = scmp.eq.s32.totalorder %s25, 0
      %p114 = por %p112, %p113
      %p115 = scmp.ne.s32.totalorder %s101, %s102
      %p116 = scmp.eq.s32.totalorder %s26, 1
      %p117 = por %p115, %p116
      %p119 = scmp.ne.s32.totalorder %s102, %s118
      %p120 = scmp.eq.s32.totalorder %s26, 0
      %p121 = por %p119, %p120
      %s122 = ssub.s32 %s20, %s27
      %p123 = scmp.eq.s32.totalorder %s122, 0
      %s125 = sadd.s32 %s124, 1
      %s126 = scalar_select %p123, %s124, %s125
      %p129 = pneg %p123
      %p130 = scmp.eq.s32.totalorder %s20, 1
      %p131 = por %p129, %p130
      %p132 = scmp.ne.s32.totalorder %s124, %s127
      %p133 = scmp.eq.s32.totalorder %s20, 0
      %p134 = por %p132, %p133
      %p135 = scmp.ne.s32.totalorder %s124, %s127
      %p136 = scmp.eq.s32.totalorder %s25, 1
      %p137 = por %p135, %p136
      %p138 = scmp.ne.s32.totalorder %s127, %s128
      %p139 = scmp.eq.s32.totalorder %s25, 0
      %p140 = por %p138, %p139
      %p141 = scmp.ne.s32.totalorder %s127, %s128
      %p142 = scmp.eq.s32.totalorder %s26, 1
      %p143 = por %p141, %p142
      %p145 = scmp.ne.s32.totalorder %s128, %s144
      %p146 = scmp.eq.s32.totalorder %s26, 0
      %p147 = por %p145, %p146
      %p148 = scmp.le.s32.totalorder 1, %s20
      %p149 = scmp.lt.s32.totalorder %s20, 3
      %p150 = pnand %p148, %p149
      %p151 = pneg %p150
      // Predicated region
      $region9: #{tpu_custom_call.1} parent=5 // pred_check
        _
      $region10: #{tpu_custom_call.1} parent=5 // pred_check_branch
        %153 = sbr.rel (%p150) target = $region12
      $region11: #{tpu_custom_call.1} parent=5 // pred_region
        %s154 = ssub.s32 %s20, 1
        // Predicated region
        $region13: #{tpu_custom_call.1} parent=11 // pred_check
          %p155 = pneg %p67
        $region14: #{tpu_custom_call.1} parent=11 // pred_check_branch
          %157 = sbr.rel (%p155) target = $region16
        $region15: #{tpu_custom_call.1} parent=11 // pred_region
          %s159 = ssub.s32 2048, 2048
          %160 = vsyncadd [#allocation6], %s159
          %s161 = sshll.u32 [#allocation5], 4
          %s162 = int_to_ptr.vmem [resolvable:$true] %s161
          %167 = dma.hbm_to_vmem [thread:$0]  %s1, 2048, %s162, [#allocation6], 64, 64, 4
        $region16: #{tpu_custom_call.1} parent=11 // pred_fallthru
          _
        // Predicated region
        $region17: #{tpu_custom_call.1} parent=11 // pred_check
          %p168 = pneg %p88
        $region18: #{tpu_custom_call.1} parent=11 // pred_check_branch
          %170 = sbr.rel (%p168) target = $region20
        $region19: #{tpu_custom_call.1} parent=11 // pred_region
          %s172 = ssub.s32 64, 64
          %173 = vsyncadd [#allocation6], %s172
          %s175 = sshll.u32 [#allocation7], 4
          %s176 = int_to_ptr.vmem [resolvable:$true] %s175
          %178 = dma.hbm_to_vmem [thread:$0]  %s2, 64, %s176, [#allocation6]
        $region20: #{tpu_custom_call.1} parent=11 // pred_fallthru
          _
      $region12: #{tpu_custom_call.1} parent=5 // pred_fallthru
        _
      %p179 = scmp.lt.s32.totalorder %s20, 2
      // Predicated region
      $region21: #{tpu_custom_call.1} parent=5 // pred_check
        %p180 = pneg %p179
      $region22: #{tpu_custom_call.1} parent=5 // pred_check_branch
        %182 = sbr.rel (%p180) target = $region24
      $region23: #{tpu_custom_call.1} parent=5 // pred_region
        // Predicated region
        $region25: #{tpu_custom_call.1} parent=23 // pred_check
          %p183 = pneg %p40
        $region26: #{tpu_custom_call.1} parent=23 // pred_check_branch
          %185 = sbr.rel (%p183) target = $region28
        $region27: #{tpu_custom_call.1} parent=23 // pred_region
          %s186 = sand.u32 %s30, 1
          %s187 = scalar_lea.sflag [#allocation3], %s186
          %s188 = sand.u32 %s30, 1
          %s189 = smul.addr %s188, 32
          %s190 = scalar_lea.vmem [#allocation2], %s189
          %s191 = smul.u32 2, %s20
          %s192 = ssub.s32 3, %s191
          %p193 = scmp.lt.s32.totalorder %s192, 2
          %s194 = scalar_select %p193, %s192, 2
          %s195 = smul.u32 128, %s194
          %s196 = smul.u32 %s195, 2
          %s198 = ssub.s32 512, %s196
          %199 = vsyncadd %s187, %s198
          %p200 = scmp.ne.s32.totalorder 0, %s196
          %s201 = smul.addr %s191, 2
          %s202 = smul.addr %s201, 128
          %s203 = scalar_lea.hbm %s0, %s202
          %s204 = smul.u32 16, %s194
          %s205 = sshll.u32 %s190, 4
          %s206 = int_to_ptr.vmem [resolvable:$true] %s205
          %s207 = sshll.u32 %s204, 4
          %211 = dma.hbm_to_vmem [thread:$0]  (%p200), %s203, %s207, %s206, %s187, 256, 256, 16
        $region28: #{tpu_custom_call.1} parent=23 // pred_fallthru
          _
        // Predicated region
        $region29: #{tpu_custom_call.1} parent=23 // pred_check
          %p212 = pneg %p108
        $region30: #{tpu_custom_call.1} parent=23 // pred_check_branch
          %214 = sbr.rel (%p212) target = $region32
        $region31: #{tpu_custom_call.1} parent=23 // pred_region
          %s215 = sand.u32 %s98, 1
          %s216 = scalar_lea.sflag [#allocation9], %s215
          %s217 = sand.u32 %s98, 1
          %s218 = smul.addr %s217, 16
          %s219 = scalar_lea.vmem [#allocation8], %s218
          %s220 = smul.u32 2, %s20
          %s221 = ssub.s32 3, %s220
          %p222 = scmp.lt.s32.totalorder %s221, 2
          %s223 = scalar_select %p222, %s221, 2
          %s224 = smul.u32 128, %s223
          %s226 = ssub.s32 256, %s224
          %227 = vsyncadd %s216, %s226
          %p228 = scmp.ne.s32.totalorder 0, %s224
          %s229 = smul.addr %s220, 128
          %s230 = scalar_lea.hbm %s3, %s229
          %s231 = smul.u32 8, %s223
          %s232 = sshll.u32 %s219, 4
          %s233 = int_to_ptr.vmem [resolvable:$true] %s232
          %s234 = sshll.u32 %s231, 4
          %238 = dma.hbm_to_vmem [thread:$0]  (%p228), %s230, %s234, %s233, %s216, 128, 128, 8
        $region32: #{tpu_custom_call.1} parent=23 // pred_fallthru
          _
      $region24: #{tpu_custom_call.1} parent=5 // pred_fallthru
        _
      %p239 = scmp.le.s32.totalorder 1, %s20
      %p240 = scmp.lt.s32.totalorder %s20, 3
      %p241 = pnand %p239, %p240
      %p242 = pneg %p241
      // Predicated region
      $region33: #{tpu_custom_call.1} parent=5 // pred_check
        _
      $region34: #{tpu_custom_call.1} parent=5 // pred_check_branch
        %244 = sbr.rel (%p241) target = $region36
      $region35: #{tpu_custom_call.1} parent=5 // pred_region
        %s245 = ssub.s32 %s20, 1
        %s246 = sand.u32 %s33, 1
        %s247 = scalar_lea.sflag [#allocation3], %s246
        %s248 = sand.u32 %s33, 1
        %s249 = smul.addr %s248, 32
        %s250 = scalar_lea.vmem [#allocation2], %s249
        // Predicated region
        $region37: #{tpu_custom_call.1} parent=35 // pred_check
          %p251 = pneg %p46
        $region38: #{tpu_custom_call.1} parent=35 // pred_check_branch
          %253 = sbr.rel (%p251) target = $region40
        $region39: #{tpu_custom_call.1} parent=35 // pred_region
          %254 = dma.done %s247, 512
        $region40: #{tpu_custom_call.1} parent=35 // pred_fallthru
          _
        // Predicated region
        $region41: #{tpu_custom_call.1} parent=35 // pred_check
          %p255 = pneg %p67
        $region42: #{tpu_custom_call.1} parent=35 // pred_check_branch
          %257 = sbr.rel (%p255) target = $region44
        $region43: #{tpu_custom_call.1} parent=35 // pred_region
          %258 = dma.done [#allocation6], 2048
        $region44: #{tpu_custom_call.1} parent=35 // pred_fallthru
          _
        // Predicated region
        $region45: #{tpu_custom_call.1} parent=35 // pred_check
          %p259 = pneg %p88
        $region46: #{tpu_custom_call.1} parent=35 // pred_check_branch
          %261 = sbr.rel (%p259) target = $region48
        $region47: #{tpu_custom_call.1} parent=35 // pred_region
          %262 = dma.done [#allocation6], 64
        $region48: #{tpu_custom_call.1} parent=35 // pred_fallthru
          _
        %s263 = sand.u32 %s101, 1
        %s264 = scalar_lea.sflag [#allocation9], %s263
        %s265 = sand.u32 %s101, 1
        %s266 = smul.addr %s265, 16
        %s267 = scalar_lea.vmem [#allocation8], %s266
        // Predicated region
        $region49: #{tpu_custom_call.1} parent=35 // pred_check
          %p268 = pneg %p114
        $region50: #{tpu_custom_call.1} parent=35 // pred_check_branch
          %270 = sbr.rel (%p268) target = $region52
        $region51: #{tpu_custom_call.1} parent=35 // pred_region
          %271 = dma.done %s264, 256
        $region52: #{tpu_custom_call.1} parent=35 // pred_fallthru
          _
        %s272 = sand.u32 %s33, 1
        %s273 = scalar_lea.sflag [#allocation3], %s272
        %s274 = sand.u32 %s33, 1
        %s275 = smul.addr %s274, 32
        %s276 = scalar_lea.vmem [#allocation2], %s275
        %p277 = pneg %p46
        %p278 = pneg %p43
        %p279 = pneg %p67
        %p280 = pneg %p64
        %p281 = pneg %p88
        %p282 = pneg %p85
        %s283 = sand.u32 %s101, 1
        %s284 = scalar_lea.sflag [#allocation9], %s283
        %s285 = sand.u32 %s101, 1
        %s286 = smul.addr %s285, 16
        %s287 = scalar_lea.vmem [#allocation8], %s286
        %p288 = pneg %p114
        %p289 = pneg %p111
        %p290 = pneg %p140
        %p291 = pneg %p137
        %s292 = sand.u32 %s127, 1
        %s293 = scalar_lea.sflag [#allocation4], %s292
        %s294 = sand.u32 %s127, 1
        %s295 = smul.addr %s294, 16
        %s296 = scalar_lea.vmem [#allocation10], %s295
        %s297 = smul.u32 2, %s25
        %s298 = ssub.s32 3, %s297
        %p299 = scmp.lt.s32.totalorder %s298, 2
        %s300 = scalar_select %p299, %s298, 2
        %s301 = smul.u32 128, %s300
        %s302 = smul.u32 %s301, 2
        %s303 = smul.u32 2, %s25
        %s304 = ssub.s32 3, %s303
        %p305 = scmp.lt.s32.totalorder %s304, 2
        %s306 = scalar_select %p305, %s304, 2
        %s307 = smul.u32 128, %s306
        %s308 = smul.u32 2, %s25
        %s309 = ssub.s32 3, %s308
        %p310 = scmp.lt.s32.totalorder %s309, 2
        %s311 = scalar_select %p310, %s309, 2
        %s312 = smul.u32 128, %s311
        %v314 = vld [vmem:[%s250] sm:$0xff]
        %v315 = vld [vmem:[%s250 + $0x8] sm:$0xff]
        %v316 = vld [vmem:[%s250 + $0x10] sm:$0xff]
        %v317 = vld [vmem:[%s250 + $0x18] sm:$0xff]
        %v318 = vpack.c.bf16 %v316, %v314
        %v319 = vpack.c.bf16 %v317, %v315
        %v320 = vld [vmem:[#allocation5] sm:$0xf]
        %v321 = vld [vmem:[#allocation5 + $0x4] sm:$0xf]
        %v322 = vld [vmem:[#allocation5 + $0x8] sm:$0xf]
        %v323 = vld [vmem:[#allocation5 + $0xc] sm:$0xf]
        %v324 = vld [vmem:[#allocation5 + $0x10] sm:$0xf]
        %v325 = vld [vmem:[#allocation5 + $0x14] sm:$0xf]
        %v326 = vld [vmem:[#allocation5 + $0x18] sm:$0xf]
        %v327 = vld [vmem:[#allocation5 + $0x1c] sm:$0xf]
        %v328 = vld [vmem:[#allocation5 + $0x20] sm:$0xf]
        %v329 = vld [vmem:[#allocation5 + $0x24] sm:$0xf]
        %v330 = vld [vmem:[#allocation5 + $0x28] sm:$0xf]
        %v331 = vld [vmem:[#allocation5 + $0x2c] sm:$0xf]
        %v332 = vld [vmem:[#allocation5 + $0x30] sm:$0xf]
        %v333 = vld [vmem:[#allocation5 + $0x34] sm:$0xf]
        %v334 = vld [vmem:[#allocation5 + $0x38] sm:$0xf]
        %v335 = vld [vmem:[#allocation5 + $0x3c] sm:$0xf]
        %v336 = vld [vmem:[#allocation5 + $0x40] sm:$0xf]
        %v337 = vld [vmem:[#allocation5 + $0x44] sm:$0xf]
        %v338 = vld [vmem:[#allocation5 + $0x48] sm:$0xf]
        %v339 = vld [vmem:[#allocation5 + $0x4c] sm:$0xf]
        %v340 = vld [vmem:[#allocation5 + $0x50] sm:$0xf]
        %v341 = vld [vmem:[#allocation5 + $0x54] sm:$0xf]
        %v342 = vld [vmem:[#allocation5 + $0x58] sm:$0xf]
        %v343 = vld [vmem:[#allocation5 + $0x5c] sm:$0xf]
        %v344 = vld [vmem:[#allocation5 + $0x60] sm:$0xf]
        %v345 = vld [vmem:[#allocation5 + $0x64] sm:$0xf]
        %v346 = vld [vmem:[#allocation5 + $0x68] sm:$0xf]
        %v347 = vld [vmem:[#allocation5 + $0x6c] sm:$0xf]
        %v348 = vld [vmem:[#allocation5 + $0x70] sm:$0xf]
        %v349 = vld [vmem:[#allocation5 + $0x74] sm:$0xf]
        %v350 = vld [vmem:[#allocation5 + $0x78] sm:$0xf]
        %v351 = vld [vmem:[#allocation5 + $0x7c] sm:$0xf]
        %v352 = vld [vmem:[#allocation7] sm:$0x7]
        %v353 = vlaneseq
        %v354 = vshrl.u32 %v353, 7
        %v355 = vsub.s32 0, %v354
        %v356 = vrot.slane %v352, %v355
        %v389 = vunpack.c.l.b16 %v320
        %v390 = vunpack.c.l.b16 %v321
        %v391 = vunpack.c.l.b16 %v322
        %v392 = vunpack.c.l.b16 %v323
        %v393 = vunpack.c.l.b16 %v324
        %v394 = vunpack.c.l.b16 %v325
        %v395 = vunpack.c.l.b16 %v326
        %v396 = vunpack.c.l.b16 %v327
        %v397 = vunpack.c.l.b16 %v328
        %v398 = vunpack.c.l.b16 %v329
        %v399 = vunpack.c.l.b16 %v330
        %v400 = vunpack.c.l.b16 %v331
        %v401 = vunpack.c.l.b16 %v332
        %v402 = vunpack.c.l.b16 %v333
        %v403 = vunpack.c.l.b16 %v334
        %v404 = vunpack.c.l.b16 %v335
        %v405 = vunpack.c.l.b16 %v336
        %v406 = vunpack.c.l.b16 %v337
        %v407 = vunpack.c.l.b16 %v338
        %v408 = vunpack.c.l.b16 %v339
        %v409 = vunpack.c.l.b16 %v340
        %v410 = vunpack.c.l.b16 %v341
        %v411 = vunpack.c.l.b16 %v342
        %v412 = vunpack.c.l.b16 %v343
        %v413 = vunpack.c.l.b16 %v344
        %v414 = vunpack.c.l.b16 %v345
        %v415 = vunpack.c.l.b16 %v346
        %v416 = vunpack.c.l.b16 %v347
        %v417 = vunpack.c.l.b16 %v348
        %v418 = vunpack.c.l.b16 %v349
        %v419 = vunpack.c.l.b16 %v350
        %v420 = vunpack.c.l.b16 %v351
        %v421 = vpack.c.b16 %v390, %v389
        %v422 = vpack.c.b16 %v392, %v391
        %v423 = vpack.c.b16 %v394, %v393
        %v424 = vpack.c.b16 %v396, %v395
        %v425 = vpack.c.b16 %v398, %v397
        %v426 = vpack.c.b16 %v400, %v399
        %v427 = vpack.c.b16 %v402, %v401
        %v428 = vpack.c.b16 %v404, %v403
        %v429 = vpack.c.b16 %v406, %v405
        %v430 = vpack.c.b16 %v408, %v407
        %v431 = vpack.c.b16 %v410, %v409
        %v432 = vpack.c.b16 %v412, %v411
        %v433 = vpack.c.b16 %v414, %v413
        %v434 = vpack.c.b16 %v416, %v415
        %v435 = vpack.c.b16 %v418, %v417
        %v436 = vpack.c.b16 %v420, %v419
        %453 = vmatprep.subr.bf16.mxu0 0
        %454 = vmatpush1.bf16.msra.mxu0 %v428
        %455 = vmatprep.subr.bf16.mxu0 0
        %456 = vmatpush1.bf16.msra.mxu0 %v427
        %457 = vmatprep.subr.bf16.mxu0 0
        %458 = vmatpush1.bf16.msra.mxu0 %v426
        %459 = vmatprep.subr.bf16.mxu0 0
        %460 = vmatpush1.bf16.msra.mxu0 %v425
        %461 = vmatprep.subr.bf16.mxu0 0
        %462 = vmatpush1.bf16.msra.mxu0 %v424
        %463 = vmatprep.subr.bf16.mxu0 0
        %464 = vmatpush1.bf16.msra.mxu0 %v423
        %465 = vmatprep.subr.bf16.mxu0 0
        %466 = vmatpush1.bf16.msra.mxu0 %v422
        %467 = vmatprep.subr.bf16.mxu0 0
        %468 = vmatpush1.bf16.msra.mxu0 %v421
        %469 = vmatprep.subr.bf16.mxu0 0
        %470 = vmatpush2.bf16.msra.mxu0 %v436
        %471 = vmatprep.subr.bf16.mxu0 0
        %472 = vmatpush2.bf16.msra.mxu0 %v435
        %473 = vmatprep.subr.bf16.mxu0 0
        %474 = vmatpush2.bf16.msra.mxu0 %v434
        %475 = vmatprep.subr.bf16.mxu0 0
        %476 = vmatpush2.bf16.msra.mxu0 %v433
        %477 = vmatprep.subr.bf16.mxu0 0
        %478 = vmatpush2.bf16.msra.mxu0 %v432
        %479 = vmatprep.subr.bf16.mxu0 0
        %480 = vmatpush2.bf16.msra.mxu0 %v431
        %481 = vmatprep.subr.bf16.mxu0 0
        %482 = vmatpush2.bf16.msra.mxu0 %v430
        %483 = vmatprep.subr.bf16.mxu0 0
        %484 = vmatpush2.bf16.msra.mxu0 %v429
        %485 = vmatprep.mubr.bf16.mxu0 %v319
        %486 = vmatmul.mubr.bf16.gmra.mxu0 %v318
        %v487 = vpop.f32.mrf.mxu0
        %v488 = vadd.f32 %v356, %v487
        %v489 = vpop.f32.mrf.mxu0
        %v490 = vpop.f32.mrf.mxu0
        %v491 = vadd.f32 %v356, %v490
        %v492 = vpop.f32.mrf.mxu0
        %493 = vdwg.mxu0
        %v494 = vld [vmem:[%s267] sm:$0xff]
        %v495 = vld [vmem:[%s267 + $0x8] sm:$0xff]
        %v496 = vadd.f32 %v488, %v494
        %v497 = vadd.f32 %v491, %v495
        %498 = vadd.xlane.f32.xlu0 %v496
        %v499 = vpop.xlane.xlu0 %498
        %500 = vadd.xlane.f32.xlu0 %v497
        %v501 = vpop.xlane.xlu0 %500
        %v502 = vmul.f32 %v499, 0.0078125
        %v503 = vmul.f32 %v501, 0.0078125
        %v504 = vsub.f32 %v496, %v502
        %v505 = vsub.f32 %v497, %v503
        %v506 = vmul.f32 %v504, %v504
        %v507 = vmul.f32 %v505, %v505
        %508 = vadd.xlane.f32.xlu0 %v506
        %v509 = vpop.xlane.xlu0 %508
        %510 = vadd.xlane.f32.xlu0 %v507
        %v511 = vpop.xlane.xlu0 %510
        %v512 = vmul.f32 %v509, 0.0078125
        %v513 = vmul.f32 %v511, 0.0078125
        %v514 = vadd.f32 %v512, 1e-07
        %v515 = vadd.f32 %v513, 1e-07
        %v516 = vrsqrt.pop %v514
        %v517 = vrsqrt.pop %v515
        %v518 = vmul.f32 %v504, %v516
        %v519 = vmul.f32 %v505, %v517
        %v520 = vlaneseq
        %v521 = vshrl.u32 %v520, 7
        %v522 = vsub.s32 1, %v521
        %v523 = vrot.slane %v352, %v522
        %v524 = vmul.f32 %v523, %v518
        %v525 = vmul.f32 %v523, %v519
        %v526 = vlaneseq
        %v527 = vshrl.u32 %v526, 7
        %v528 = vsub.s32 2, %v527
        %v529 = vrot.slane %v352, %v528
        %v530 = vadd.f32 %v524, %v529
        %v531 = vadd.f32 %v525, %v529
        %532 = vst [vmem:[%s296] sm:$0xff] %v530
        %533 = vst [vmem:[%s296 + $0x8] sm:$0xff] %v531
        %s534 = sand.u32 %s127, 1
        %s535 = scalar_lea.sflag [#allocation4], %s534
        %s536 = sand.u32 %s127, 1
        %s537 = smul.addr %s536, 16
        %s538 = scalar_lea.vmem [#allocation10], %s537
        // Predicated region
        $region53: #{tpu_custom_call.1} parent=35 // pred_check
          %p539 = pneg %p137
        $region54: #{tpu_custom_call.1} parent=35 // pred_check_branch
          %541 = sbr.rel (%p539) target = $region56
        $region55: #{tpu_custom_call.1} parent=35 // pred_region
          %s542 = smul.u32 2, %s25
          %s543 = ssub.s32 3, %s542
          %p544 = scmp.lt.s32.totalorder %s543, 2
          %s545 = scalar_select %p544, %s543, 2
          %s546 = smul.u32 128, %s545
          %s548 = ssub.s32 256, %s546
          %549 = vsyncadd %s535, %s548
          %p550 = scmp.ne.s32.totalorder 0, %s546
          %s551 = smul.addr %s542, 128
          %s552 = scalar_lea.hbm %s4, %s551
          %s553 = smul.u32 8, %s545
          %s554 = sshll.u32 %s538, 4
          %s555 = int_to_ptr.vmem [resolvable:$true] %s554
          %s556 = sshll.u32 %s553, 4
          %560 = dma.vmem_to_hbm [thread:$0]  (%p550), %s555, %s556, %s552, %s535, 128, 128, 8
        $region56: #{tpu_custom_call.1} parent=35 // pred_fallthru
          _
      $region36: #{tpu_custom_call.1} parent=5 // pred_fallthru
        _
      %p561 = scmp.le.s32.totalorder 2, %s20
      // Predicated region
      $region57: #{tpu_custom_call.1} parent=5 // pred_check
        %p562 = pneg %p561
      $region58: #{tpu_custom_call.1} parent=5 // pred_check_branch
        %564 = sbr.rel (%p562) target = $region60
      $region59: #{tpu_custom_call.1} parent=5 // pred_region
        %s565 = ssub.s32 %s20, 2
        // Predicated region
        $region61: #{tpu_custom_call.1} parent=59 // pred_check
          %p566 = pneg %p143
        $region62: #{tpu_custom_call.1} parent=59 // pred_check_branch
          %568 = sbr.rel (%p566) target = $region64
        $region63: #{tpu_custom_call.1} parent=59 // pred_region
          %s569 = sand.u32 %s128, 1
          %s570 = scalar_lea.sflag [#allocation4], %s569
          %s571 = sand.u32 %s128, 1
          %s572 = smul.addr %s571, 16
          %s573 = scalar_lea.vmem [#allocation10], %s572
          %574 = dma.done %s570, 256
        $region64: #{tpu_custom_call.1} parent=59 // pred_fallthru
          _
      $region60: #{tpu_custom_call.1} parent=5 // pred_fallthru
        _
    $region6: #{tpu_custom_call.1} parent=1 // loop_footer
      %s24 = sadd.s32 1, %s20
    $region7: #{tpu_custom_call.1} parent=1 // loop_footer_branch
      %19 = sbr.rel target = $region3
    $region8: #{tpu_custom_call.1} parent=1 // loop_exit
      _
    %575 = vsyncpa [#allocation3], 1
    %s576 = scalar_lea.sflag [#allocation3], 1
    %577 = vsyncpa %s576, 1
    %578 = vsyncpa [#allocation6], 1
    %579 = vsyncpa [#allocation9], 1
    %s580 = scalar_lea.sflag [#allocation9], 1
    %581 = vsyncpa %s580, 1
    %582 = vsyncpa [#allocation4], 1
    %s583 = scalar_lea.sflag [#allocation4], 1
    %584 = vsyncpa %s583, 1

</llo_original>
